<compile_context>
chip_gen: v6e
topology: v6e:2x2x1
jax: 0.10.0
libtpu: 0.0.40
codegen_flags: <defaults>
</compile_context>

<pallas_src>
import jax
import jax.numpy as jnp
from jax.experimental import pallas as pl
from jax.experimental.pallas import tpu as pltpu

HIDDEN = 100      # logical feature width (matches the PyTorch module)
PADDED = 128      # lane-aligned width for fc1 outputs / fc_final inputs
MAX_TM = 4096     # largest batch tile (~8 MiB of double-buffered VMEM)
MIN_TM = 8        # sublane granularity


def _cdiv(a, b):
    return -(-a // b)


def _round_up(n, m):
    return _cdiv(n, m) * m


def _choose_tiling(batch):
    """Pick (tm, padded_batch): tm a multiple of 8, >= 2 grid steps whenever
    there is enough work (v7x megacore), padding waste bounded by tm-1 rows."""
    if batch >= 2 * MIN_TM:
        n_steps = max(2, _cdiv(batch, MAX_TM))
    else:
        n_steps = 1
    tm = min(_round_up(_cdiv(batch, n_steps), MIN_TM), MAX_TM)
    return tm, _round_up(batch, tm)


def domain_pred_kernel(x_ref, w1_ref, b1_ref, w2_ref, b2_ref, o_ref):
    # x: (tm, 100) f32; w1: (100, 128) bf16; b1, w2: (1, 128) f32;
    # b2: (1, 1) f32 scalar in SMEM; o: (tm, 1) f32.
    x = x_ref[...].astype(jnp.bfloat16)        # VPU cast; MXU operands in bf16
    # fc1: bf16 MXU matmul (K=100, compiler-masked) with f32 accumulation.
    h = jnp.dot(x, w1_ref[...], preferred_element_type=jnp.float32)
    h = jnp.maximum(h + b1_ref[...], 0.0)      # f32 epilogue (v5e-safe)
    # fc_final: width-1 output -> VPU multiply + XLU cross-lane reduce, scalar bias.
    o_ref[...] = jnp.sum(h * w2_ref[...], axis=-1, keepdims=True) + b2_ref[0, 0]


def init_params(key):
    """Deterministic init mirroring nn.Linear shapes (pre-transposed to (in, out))."""
    k1, k2, k3, k4 = jax.random.split(key, 4)
    bound = 1.0 / jnp.sqrt(HIDDEN)
    w1 = jax.random.uniform(k1, (HIDDEN, HIDDEN), jnp.float32, -bound, bound)
    b1 = jax.random.uniform(k2, (1, HIDDEN), jnp.float32, -bound, bound)
    w2 = jax.random.uniform(k3, (HIDDEN, 1), jnp.float32, -bound, bound)
    b2 = jax.random.uniform(k4, (1, 1), jnp.float32, -bound, bound)
    return w1, b1, w2, b2


def pad_params(params):
    """One-time parameter prep: zero-pad the hidden axis 100 -> 128 and store
    the MXU operand (w1) as bf16.  Padded h columns are relu(0 + 0) = 0 and the
    padded w2 entries are 0, so the forward result is unchanged."""
    w1, b1, w2, b2 = params
    w1p = jnp.zeros((HIDDEN, PADDED), jnp.float32).at[:, :HIDDEN].set(w1)
    w1p = w1p.astype(jnp.bfloat16)
    b1p = jnp.zeros((1, PADDED), jnp.float32).at[:, :HIDDEN].set(b1)
    w2p = jnp.zeros((1, PADDED), jnp.float32).at[:, :HIDDEN].set(w2.reshape(1, HIDDEN))
    b2p = b2.reshape(1, 1).astype(jnp.float32)
    return w1p, b1p, w2p, b2p


def domain_pred_forward(inputs, padded_params):
    """inputs = (x, domain) as in the PyTorch module; domain is unused."""
    x, domain = inputs
    _ = domain[:, None]  # domain.unsqueeze(1) — computed but unused (as in torch)

    w1p, b1p, w2p, b2p = padded_params
    batch = x.shape[0]
    tm, b_pad = _choose_tiling(batch)

    # Batch is padded only when the tile does not divide it (waste <= tm-1
    # rows); the feature axis is never padded/copied on the wrapper side.
    xp = x if b_pad == batch else jnp.pad(x, ((0, b_pad - batch), (0, 0)))

    vmem = pltpu.MemorySpace.VMEM
    out = pl.pallas_call(
        domain_pred_kernel,
        out_shape=jax.ShapeDtypeStruct((b_pad, 1), jnp.float32),
        grid_spec=pl.GridSpec(
            grid=(b_pad // tm,),
            in_specs=[
                pl.BlockSpec((tm, HIDDEN), lambda i: (i, 0), memory_space=vmem),
                pl.BlockSpec((HIDDEN, PADDED), lambda i: (0, 0), memory_space=vmem),
                pl.BlockSpec((1, PADDED), lambda i: (0, 0), memory_space=vmem),
                pl.BlockSpec((1, PADDED), lambda i: (0, 0), memory_space=vmem),
                pl.BlockSpec(memory_space=pltpu.MemorySpace.SMEM),
            ],
            out_specs=pl.BlockSpec((tm, 1), lambda i: (i, 0), memory_space=vmem),
        ),
        compiler_params=pltpu.CompilerParams(
            dimension_semantics=("parallel",),
            vmem_limit_bytes=32 * 1024 * 1024,
        ),
    )(xp, w1p, b1p, w2p, b2p)
    return out[:batch]


def reference_forward_f32(inputs, params):
    x, _ = inputs
    w1, b1, w2, b2 = params
    h = jnp.maximum(x @ w1 + b1, 0.0)
    return h @ w2 + b2


def reference_forward_bf16(inputs, params):
    """Mirrors the kernel's numerics (bf16 MXU operands, f32 accumulation/epilogue)."""
    x, _ = inputs
    w1, b1, w2, b2 = params
    h = jnp.dot(x.astype(jnp.bfloat16), w1.astype(jnp.bfloat16),
                preferred_element_type=jnp.float32) + b1
    h = jnp.maximum(h, 0.0)
    return jnp.sum(h * w2.reshape(1, HIDDEN), axis=-1, keepdims=True) + b2


if __name__ == "__main__":
    key = jax.random.PRNGKey(0)
    kx, kd, kp = jax.random.split(key, 3)

    batch = 8
    x = jax.random.normal(kx, (batch, HIDDEN), jnp.float32)
    domain = jax.random.normal(kd, (batch,), jnp.float32)
    params = init_params(kp)
    padded_params = pad_params(params)

    out = domain_pred_forward((x, domain), padded_params)
    out = jax.block_until_ready(out)

    assert out.shape == (batch, 1)
    ref_bf16 = reference_forward_bf16((x, domain), params)
    ref_f32 = reference_forward_f32((x, domain), params)
    assert jnp.allclose(out, ref_bf16, atol=1e-3, rtol=1e-3)   # matched numerics
    assert jnp.allclose(out, ref_f32, atol=1e-1, rtol=1e-1)    # bf16 vs f32 sanity

    print("KERNEL_OK")
</pallas_src>

<mosaic_0001>
module attributes {stable_mosaic.version = 11 : i64} {
  func.func @domain_pred_kernel(%arg0: i32, %arg1: memref<8x100xf32, #tpu.memory_space<vmem>>, %arg2: memref<100x128xbf16, #tpu.memory_space<vmem>>, %arg3: memref<1x128xf32, #tpu.memory_space<vmem>>, %arg4: memref<1x128xf32, #tpu.memory_space<vmem>>, %arg5: memref<1x1xf32, #tpu.memory_space<smem>>, %arg6: memref<8x1xf32, #tpu.memory_space<vmem>>) attributes {dimension_semantics = [#tpu.dimension_semantics<parallel>], iteration_bounds = array<i64: 1>, scalar_prefetch = 0 : i64, scratch_operands = 0 : i64, tpu.core_type = #tpu.core_type<tc>, window_params = [{transform_indices = @transform_0, window_bounds = array<i64: 8, 100>}, {pipeline_mode = #tpu.pipeline_mode<synchronous>, transform_indices = @transform_1, window_bounds = array<i64: 100, 128>}, {pipeline_mode = #tpu.pipeline_mode<synchronous>, transform_indices = @transform_2, window_bounds = array<i64: 1, 128>}, {pipeline_mode = #tpu.pipeline_mode<synchronous>, transform_indices = @transform_3, window_bounds = array<i64: 1, 128>}, {transform_indices = @transform_4, window_bounds = array<i64: 1, 1>}, {transform_indices = @transform_5, window_bounds = array<i64: 8, 1>}]} {
    %c0 = arith.constant 0 : index
    %c0_0 = arith.constant 0 : index
    %0 = vector.load %arg1[%c0, %c0_0] : memref<8x100xf32, #tpu.memory_space<vmem>>, vector<8x100xf32>
    %1 = arith.truncf %0 : vector<8x100xf32> to vector<8x100xbf16>
    %c0_1 = arith.constant 0 : index
    %c0_2 = arith.constant 0 : index
    %2 = vector.load %arg2[%c0_1, %c0_2] : memref<100x128xbf16, #tpu.memory_space<vmem>>, vector<100x128xbf16>
    %cst = arith.constant dense<0.000000e+00> : vector<8x128xf32>
    %3 = tpu.matmul %1, %2, %cst {dimension_numbers = #tpu.dot_dimension_numbers<[1], [0], [0], [1], [0, 0, 1, 1], [], []>} : vector<8x100xbf16>, vector<100x128xbf16>, vector<8x128xf32> -> vector<8x128xf32>
    %c0_3 = arith.constant 0 : index
    %c0_4 = arith.constant 0 : index
    %4 = vector.load %arg3[%c0_3, %c0_4] : memref<1x128xf32, #tpu.memory_space<vmem>>, vector<1x128xf32>
    %5 = vector.broadcast %4 : vector<1x128xf32> to vector<8x128xf32>
    %6 = arith.addf %3, %5 : vector<8x128xf32>
    %cst_5 = arith.constant 0.000000e+00 : f32
    %7 = vector.broadcast %cst_5 : f32 to vector<8x128xf32>
    %8 = arith.maximumf %6, %7 : vector<8x128xf32>
    %c0_6 = arith.constant 0 : index
    %c0_7 = arith.constant 0 : index
    %9 = vector.load %arg4[%c0_6, %c0_7] : memref<1x128xf32, #tpu.memory_space<vmem>>, vector<1x128xf32>
    %10 = vector.broadcast %9 : vector<1x128xf32> to vector<8x128xf32>
    %11 = arith.mulf %8, %10 : vector<8x128xf32>
    %cst_8 = arith.constant dense<0.000000e+00> : vector<8xf32>
    %12 = vector.multi_reduction <add>, %11, %cst_8 [1] : vector<8x128xf32> to vector<8xf32>
    %13 = vector.shape_cast %12 : vector<8xf32> to vector<8x1xf32>
    %c0_9 = arith.constant 0 : index
    %c0_10 = arith.constant 0 : index
    %14 = memref.load %arg5[%c0_9, %c0_10] : memref<1x1xf32, #tpu.memory_space<smem>>
    %15 = vector.broadcast %14 : f32 to vector<8x1xf32>
    %16 = arith.addf %13, %15 : vector<8x1xf32>
    %c0_11 = arith.constant 0 : index
    %c0_12 = arith.constant 0 : index
    %17 = vector.load %arg6[%c0_11, %c0_12] : memref<8x1xf32, #tpu.memory_space<vmem>>, vector<8x1xf32>
    tpu.vector_store %arg6[%c0_11, %c0_12], %16 {strides = array<i32>} : memref<8x1xf32, #tpu.memory_space<vmem>>, vector<8x1xf32>,
    return
  }
  func.func @transform_0(%arg0: i32) -> (i32, i32) {
    %c0_i32 = arith.constant 0 : i32
    %c0_i32_0 = arith.constant 0 : i32
    return %arg0, %c0_i32 : i32, i32
  }
  func.func @transform_1(%arg0: i32) -> (i32, i32) {
    %c0_i32 = arith.constant 0 : i32
    %c0_i32_0 = arith.constant 0 : i32
    %c0_i32_1 = arith.constant 0 : i32
    return %c0_i32, %c0_i32_0 : i32, i32
  }
  func.func @transform_2(%arg0: i32) -> (i32, i32) {
    %c0_i32 = arith.constant 0 : i32
    %c0_i32_0 = arith.constant 0 : i32
    %c0_i32_1 = arith.constant 0 : i32
    return %c0_i32, %c0_i32_0 : i32, i32
  }
  func.func @transform_3(%arg0: i32) -> (i32, i32) {
    %c0_i32 = arith.constant 0 : i32
    %c0_i32_0 = arith.constant 0 : i32
    %c0_i32_1 = arith.constant 0 : i32
    return %c0_i32, %c0_i32_0 : i32, i32
  }
  func.func @transform_4(%arg0: i32) -> (i32, i32) {
    %c0_i32 = arith.constant 0 : i32
    %c0_i32_0 = arith.constant 0 : i32
    %c0_i32_1 = arith.constant 0 : i32
    return %c0_i32, %c0_i32_0 : i32, i32
  }
  func.func @transform_5(%arg0: i32) -> (i32, i32) {
    %c0_i32 = arith.constant 0 : i32
    %c0_i32_0 = arith.constant 0 : i32
    return %arg0, %c0_i32 : i32, i32
  }
}

</mosaic_0001>

<llo_original>
// kernel: tpu_custom_call.1
$region0: #{tpu_custom_call.1}
  #allocation0 [shape = 'u32[]', space=smem, size = 0x4, offset = 0x4, fixed_abs, tag = 'smem constant byte address 0x4 - core index']
  #allocation1 [shape = 'u32[144,128]{1,0:T(1,128)}', space=vmem, size = 0x12000, scoped, tag = 'internal scratch']
  #allocation2 [shape = 'f32[1,1]{1,0:T(1,128)S(6)}', space=smem, size = 0x200, scoped, tag = 'scoped memory for tpu_custom_call.1']
  %s0 = inlined_call_operand.hbm [shape: f32[8,100], index: 0, kind: input, shape index: {}]
  %s1 = inlined_call_operand.hbm [shape: bf16[100,128], index: 1, kind: input, shape index: {}]
  %s2 = inlined_call_operand.vmem [shape: f32[1,128], index: 2, kind: input, shape index: {}]
  %s3 = inlined_call_operand.vmem [shape: f32[1,128], index: 3, kind: input, shape index: {}]
  %s4 = inlined_call_operand.<no memory space> [shape: f32[1,1], index: 4, kind: input, shape index: {}]
  %s5 = inlined_call_operand.vmem [shape: f32[8,1], index: 5, kind: output, shape index: {}]
  %s6 = sld [smem:[#allocation0]]
  $region38: #{tpu_custom_call.1} parent=0
    _
  %s8 = ssub.s32 1, %s6
  %s9 = scalar_select 0, %s8, %s6
  %10 = sst [smem:[#allocation2]] %s4
  $region1: #{tpu_custom_call.1} parent=0
    #allocation3 [shape = 'u8[4096]{0}', space=vmem, size = 0x1000, scoped, tag = 'input window, operand 0, single buffered']
    #allocation4 [shape = 's32[1]{0}', space=sflag, size = 0x4, scoped, tag = 'scoped memory for tpu_custom_call.1']
    #allocation5 [shape = 'u8[26624]{0}', space=vmem, size = 0x6800, scoped, tag = 'input window, operand 1, single buffered']
    #allocation6 [shape = 's32[1]{0}', space=sflag, size = 0x4, scoped, tag = 'scoped memory for tpu_custom_call.1']
    %11 = vsyncpa [#allocation4], 0
    %12 = vsyncpa [#allocation6], 0
    // Predicated region
    $region2: #{tpu_custom_call.1} parent=1 // pred_check
      _
    $region3: #{tpu_custom_call.1} parent=1 // pred_check_branch
      %14 = sbr.rel (0) target = $region5
    $region4: #{tpu_custom_call.1} parent=1 // pred_region
      %s16 = ssub.s32 128, 128
      %17 = vsyncadd [#allocation4], %s16
      %s19 = sshll.u32 [#allocation3], 4
      %s20 = int_to_ptr.vmem [resolvable:$true] %s19
      %22 = dma.hbm_to_vmem [thread:$0]  %s0, 128, %s20, [#allocation4]
    $region5: #{tpu_custom_call.1} parent=1 // pred_fallthru
      _
    // Predicated region
    $region6: #{tpu_custom_call.1} parent=1 // pred_check
      _
    $region7: #{tpu_custom_call.1} parent=1 // pred_check_branch
      %24 = sbr.rel (0) target = $region9
    $region8: #{tpu_custom_call.1} parent=1 // pred_region
      %s26 = ssub.s32 832, 832
      %27 = vsyncadd [#allocation6], %s26
      %s28 = sshll.u32 [#allocation5], 4
      %s29 = int_to_ptr.vmem [resolvable:$true] %s28
      %34 = dma.hbm_to_vmem [thread:$0]  %s1, 832, %s29, [#allocation6], 64, 64, 4
    $region9: #{tpu_custom_call.1} parent=1 // pred_fallthru
      _
    // Predicated region
    $region10: #{tpu_custom_call.1} parent=1 // pred_check
      _
    $region11: #{tpu_custom_call.1} parent=1 // pred_check_branch
      %36 = sbr.rel (0) target = $region13
    $region12: #{tpu_custom_call.1} parent=1 // pred_region
      _
    $region13: #{tpu_custom_call.1} parent=1 // pred_fallthru
      _
    // Predicated region
    $region14: #{tpu_custom_call.1} parent=1 // pred_check
      _
    $region15: #{tpu_custom_call.1} parent=1 // pred_check_branch
      %38 = sbr.rel (0) target = $region17
    $region16: #{tpu_custom_call.1} parent=1 // pred_region
      _
    $region17: #{tpu_custom_call.1} parent=1 // pred_fallthru
      _
    // Predicated region
    $region18: #{tpu_custom_call.1} parent=1 // pred_check
      _
    $region19: #{tpu_custom_call.1} parent=1 // pred_check_branch
      %40 = sbr.rel (0) target = $region21
    $region20: #{tpu_custom_call.1} parent=1 // pred_region
      _
    $region21: #{tpu_custom_call.1} parent=1 // pred_fallthru
      _
    // Predicated region
    $region22: #{tpu_custom_call.1} parent=1 // pred_check
      _
    $region23: #{tpu_custom_call.1} parent=1 // pred_check_branch
      %42 = sbr.rel (0) target = $region25
    $region24: #{tpu_custom_call.1} parent=1 // pred_region
      %43 = dma.done [#allocation4], 128
    $region25: #{tpu_custom_call.1} parent=1 // pred_fallthru
      _
    // Predicated region
    $region26: #{tpu_custom_call.1} parent=1 // pred_check
      _
    $region27: #{tpu_custom_call.1} parent=1 // pred_check_branch
      %45 = sbr.rel (0) target = $region29
    $region28: #{tpu_custom_call.1} parent=1 // pred_region
      %46 = dma.done [#allocation6], 832
    $region29: #{tpu_custom_call.1} parent=1 // pred_fallthru
      _
    %v48 = vld [vmem:[#allocation3] sm:$0xff]
    %v49 = vpack.c.bf16 %v48, %v48
    %v50 = vld [vmem:[#allocation5] sm:$0xf]
    %v51 = vld [vmem:[#allocation5 + $0x4] sm:$0xf]
    %v52 = vld [vmem:[#allocation5 + $0x8] sm:$0xf]
    %v53 = vld [vmem:[#allocation5 + $0xc] sm:$0xf]
    %v54 = vld [vmem:[#allocation5 + $0x10] sm:$0xf]
    %v55 = vld [vmem:[#allocation5 + $0x14] sm:$0xf]
    %v56 = vld [vmem:[#allocation5 + $0x18] sm:$0xf]
    %v57 = vld [vmem:[#allocation5 + $0x1c] sm:$0xf]
    %v58 = vld [vmem:[#allocation5 + $0x20] sm:$0xf]
    %v59 = vld [vmem:[#allocation5 + $0x24] sm:$0xf]
    %v60 = vld [vmem:[#allocation5 + $0x28] sm:$0xf]
    %v61 = vld [vmem:[#allocation5 + $0x2c] sm:$0xf]
    %v62 = vld [vmem:[#allocation5 + $0x30] sm:$0x3]
    %v63 = vld [vmem:[%s2] sm:$0x1]
    %v65 = vlaneseq
    %v66 = vshrl.u32 %v65, 7
    %v67 = vsub.s32 0, %v66
    %v68 = vrot.slane %v63, %v67
    %v83 = vunpack.c.l.b16 %v50
    %v84 = vunpack.c.l.b16 %v51
    %v85 = vunpack.c.l.b16 %v52
    %v86 = vunpack.c.l.b16 %v53
    %v87 = vunpack.c.l.b16 %v54
    %v88 = vunpack.c.l.b16 %v55
    %v89 = vunpack.c.l.b16 %v56
    %v90 = vunpack.c.l.b16 %v57
    %v91 = vunpack.c.l.b16 %v58
    %v92 = vunpack.c.l.b16 %v59
    %v93 = vunpack.c.l.b16 %v60
    %v94 = vunpack.c.l.b16 %v61
    %v95 = vunpack.c.l.b16 %v62
    %v96 = vpack.c.b16 %v84, %v83
    %v97 = vpack.c.b16 %v86, %v85
    %v98 = vpack.c.b16 %v88, %v87
    %v99 = vpack.c.b16 %v90, %v89
    %v100 = vpack.c.b16 %v92, %v91
    %v101 = vpack.c.b16 %v94, %v93
    %v102 = vpack.c.b16 %v95, %v95
    %vm109 = vcmask 818176
    %v111 = vsel %vm109, %v49, 0
    %vm113 = vcmask 1041408
    %v115 = vsel %vm113, %v102, 0
    %117 = vmatprep.subr.bf16.mxu0 0
    %118 = vmatpush1.bf16.msra.mxu0 0
    %119 = vmatprep.subr.bf16.mxu0 0
    %120 = vmatpush1.bf16.msra.mxu0 %v115
    %121 = vmatprep.subr.bf16.mxu0 0
    %122 = vmatpush1.bf16.msra.mxu0 %v101
    %123 = vmatprep.subr.bf16.mxu0 0
    %124 = vmatpush1.bf16.msra.mxu0 %v100
    %125 = vmatprep.subr.bf16.mxu0 0
    %126 = vmatpush1.bf16.msra.mxu0 %v99
    %127 = vmatprep.subr.bf16.mxu0 0
    %128 = vmatpush1.bf16.msra.mxu0 %v98
    %129 = vmatprep.subr.bf16.mxu0 0
    %130 = vmatpush1.bf16.msra.mxu0 %v97
    %131 = vmatprep.subr.bf16.mxu0 0
    %132 = vmatpush1.bf16.msra.mxu0 %v96
    %133 = vmatprep.subr.bf16.mxu0 0
    %134 = vmatpush2.bf16.msra.mxu0 0
    %135 = vmatprep.subr.bf16.mxu0 0
    %136 = vmatpush2.bf16.msra.mxu0 0
    %137 = vmatprep.subr.bf16.mxu0 0
    %138 = vmatpush2.bf16.msra.mxu0 0
    %139 = vmatprep.subr.bf16.mxu0 0
    %140 = vmatpush2.bf16.msra.mxu0 0
    %141 = vmatprep.subr.bf16.mxu0 0
    %142 = vmatpush2.bf16.msra.mxu0 0
    %143 = vmatprep.subr.bf16.mxu0 0
    %144 = vmatpush2.bf16.msra.mxu0 0
    %145 = vmatprep.subr.bf16.mxu0 0
    %146 = vmatpush2.bf16.msra.mxu0 0
    %147 = vmatprep.subr.bf16.mxu0 0
    %148 = vmatpush2.bf16.msra.mxu0 0
    %149 = vmatprep.mubr.bf16.mxu0 0
    %150 = vmatmul.mubr.bf16.gmra.mxu0 %v111
    %v151 = vpop.f32.mrf.mxu0
    %v152 = vadd.f32 %v68, %v151
    %v153 = vpop.f32.mrf.mxu0
    %v154 = vpop.f32.mrf.mxu0
    %v155 = vpop.f32.mrf.mxu0
    %156 = vdwg.mxu0
    %v157 = vmax.f32 %v152, 0.0
    %v158 = vld [vmem:[%s3] sm:$0x1]
    %v160 = vlaneseq
    %v161 = vshrl.u32 %v160, 7
    %v162 = vsub.s32 0, %v161
    %v163 = vrot.slane %v158, %v162
    %v165 = vmul.f32 %v157, %v163
    %166 = vadd.xlane.f32.xlu0 %v165
    %v167 = vpop.xlane.xlu0 %166
    %s168 = sld [smem:[#allocation2]]
    %v169 = vstv %s168
    %v170 = vadd.f32 %v167, %v169
    %vm171 = vcmask 7168
    %172 = vst.msk [vmem:[%s5] sm:$0xff] %vm171, %v170
    // Predicated region
    $region30: #{tpu_custom_call.1} parent=1 // pred_check
      _
    $region31: #{tpu_custom_call.1} parent=1 // pred_check_branch
      %174 = sbr.rel (0) target = $region33
    $region32: #{tpu_custom_call.1} parent=1 // pred_region
      _
    $region33: #{tpu_custom_call.1} parent=1 // pred_fallthru
      _
    // Predicated region
    $region34: #{tpu_custom_call.1} parent=1 // pred_check
      _
    $region35: #{tpu_custom_call.1} parent=1 // pred_check_branch
      %176 = sbr.rel (0) target = $region37
    $region36: #{tpu_custom_call.1} parent=1 // pred_region
      _
    $region37: #{tpu_custom_call.1} parent=1 // pred_fallthru
      _
    %177 = vsyncpa [#allocation4], 1
    %178 = vsyncpa [#allocation6], 1

</llo_original>
